<compile_context>
chip_gen: v7x
topology: tpu7x:2x2x1
jax: 0.10.0
libtpu: 0.0.40
codegen_flags: <defaults>
</compile_context>

<pallas_src>
import functools

import numpy as np
import jax
import jax.numpy as jnp
from jax.experimental import pallas as pl
from jax.experimental.pallas import tpu as pltpu

WIRES = 4                 # qubits
FILTER_SIZE = 2           # 2x2 patches  -> FILTER_SIZE**2 == WIRES inputs
STRIDE = 1
OUT_CHANNELS = 4          # one <Z_i> per wire (module default out_channels=4)
N_LAYERS = 2              # entangling layers (weights shape = (N_LAYERS, WIRES))
DIM = 2 ** WIRES          # statevector dimension = 16
MAX_TILE = 2048           # lanes (patches) per grid step -- amortizes step overhead
CHUNK = 512               # in-kernel sub-chunk; bounds (16, CHUNK) f32 live set
MIN_TILE = 256            # smallest tile (tiny inputs / grid balancing)

assert FILTER_SIZE * FILTER_SIZE == WIRES
assert MAX_TILE % CHUNK == 0 and MIN_TILE % 128 == 0


# --------------------------------------------------------------------------
# Fixed numpy constant (compile-time): CNOT ring permutation.
# --------------------------------------------------------------------------
def _cnot_np(control, target):
    m = np.zeros((DIM, DIM), np.float32)
    for k in range(DIM):
        cbit = (k >> (WIRES - 1 - control)) & 1
        kp = k ^ (cbit << (WIRES - 1 - target))
        m[kp, k] = 1.0
    return m


# state' = C(3,0) @ C(2,3) @ C(1,2) @ C(0,1) @ state
_CNOT_RING_NP = functools.reduce(lambda acc, m: m @ acc,
                                 [_cnot_np(i, (i + 1) % WIRES) for i in range(WIRES)])


# --------------------------------------------------------------------------
# Pallas kernel: per lane-dense (4, TILE) block of patches, loop over fixed
# CHUNK-lane slices; per chunk build the RY(pi*x) product-state amplitudes,
# apply the circuit unitary on the MXU and read out <Z_i> on the VPU.
#   x_ref : (4, TILE)   feature-major patch values
#   u_ref : (16, 16)    circuit unitary (bf16, DMA'd once)
#   o_ref : (4, TILE)   <Z_i> per patch (lane-dense -> unmasked stores)
# --------------------------------------------------------------------------
def quonv_kernel(x_ref, u_ref, o_ref, *, chunk, n_chunks):
    u = u_ref[...]                                            # (16, 16) bf16

    # Hoisted basis-state bit masks and Z-sign columns (tiny (16, 1)).
    k = jax.lax.broadcasted_iota(jnp.int32, (DIM, 1), 0)
    bits = [(k >> (WIRES - 1 - w)) & 1 for w in range(WIRES)]
    signs = [(1.0 - 2.0 * bits[w]).astype(jnp.float32) for w in range(WIRES)]

    def body(ci, carry):
        off = pl.multiple_of(ci * chunk, chunk)
        x = x_ref[:, pl.ds(off, chunk)].astype(jnp.float32)   # (4, C)
        half = (0.5 * jnp.pi) * x                             # theta/2 of RY(pi*x)
        # One EUP pass over a full 8-sublane array: cos(t - pi/2) == sin(t).
        angles = jnp.concatenate([half, half - (0.5 * jnp.pi)], axis=0)   # (8, C)
        cs = jnp.cos(angles)                                  # rows 0..3: cos, 4..7: sin

        # amp[k, p] = prod_w (bit_w(k) ? sin_w : cos_w)   (f32 chain for accuracy).
        # TODO(synk): on v6e/v7x this chain could run in bf16 (native bf16 VALU)
        #             at ~half the vreg ops, but it eats into the 2e-2 tolerance.
        amp = None
        for w in range(WIRES):                                # wire 0 = MSB
            fac = jnp.where(bits[w] == 1,
                            cs[WIRES + w:WIRES + w + 1, :],   # sin(half_w)
                            cs[w:w + 1, :])                   # cos(half_w)
            amp = fac if amp is None else amp * fac           # (16, C)

        # psi = U @ amp on the MXU; bf16 operands, f32 accumulation.
        psi = jnp.dot(u, amp.astype(jnp.bfloat16),
                      preferred_element_type=jnp.float32)     # (16, C)
        probs = psi * psi

        # <Z_i> readout in exact f32 on the VPU/XLU (deterministic precision,
        # frees the MXU result path): sum_k (1 - 2*bit_i(k)) * probs[k].
        z = jnp.concatenate(
            [jnp.sum(probs * signs[w], axis=0, keepdims=True) for w in range(WIRES)],
            axis=0)                                           # (4, C)
        o_ref[:, pl.ds(off, chunk)] = z
        return carry

    jax.lax.fori_loop(0, n_chunks, body, 0, unroll=True)


# --------------------------------------------------------------------------
# Glue: patch extraction replicating torch's unfold/unfold/transpose(2,3)/
# reshape exactly, returned feature-major (f*f, N) so the patch index lands
# in the TPU lane dimension.
# --------------------------------------------------------------------------
def _convolve_t(img):
    bs, h, w, ch = img.shape
    f, st = FILTER_SIZE, STRIDE
    h_out = (h - f) // st + 1
    w_out = (w - f) // st + 1
    rows = (jnp.arange(h_out) * st)[:, None] + jnp.arange(f)[None, :]   # (h_out, f)
    cols = (jnp.arange(w_out) * st)[:, None] + jnp.arange(f)[None, :]   # (w_out, f)
    R = rows[:, None, :, None]                                          # (h_out,1,f,1)
    C = cols[None, :, None, :]                                          # (1,w_out,1,f)
    patches = img[:, R, C, :]                        # (bs, h_out, w_out, f_hi, f_wi, ch)
    # torch row order after unfold/unfold/transpose(2,3).reshape: (b, io, c, jo),
    # torch column order: (wi, hi).  Feature-major: columns first.
    patches = jnp.transpose(patches, (4, 3, 0, 1, 5, 2))  # (f_wi, f_hi, bs, h_out, ch, w_out)
    return patches.reshape(f * f, -1)


# --------------------------------------------------------------------------
# Glue: traceable (jnp) construction of the fixed 16x16 circuit unitary, so
# quonv_layer can be jitted / differentiated with traced weights.
# --------------------------------------------------------------------------
def _ry2(theta):
    t = theta * 0.5
    c, s = jnp.cos(t), jnp.sin(t)
    return jnp.stack([jnp.stack([c, -s]), jnp.stack([s, c])])


def _build_unitary(weights):
    weights = weights.astype(jnp.float32)
    cnot_ring = jnp.asarray(_CNOT_RING_NP)
    u = jnp.eye(DIM, dtype=jnp.float32)
    for l in range(N_LAYERS):
        ry_layer = functools.reduce(jnp.kron, [_ry2(weights[l, i]) for i in range(WIRES)])
        u = cnot_ring @ (ry_layer @ u)
    return u


def _choose_tile(n):
    # Biggest lane tile wins (fewest ~0.35us grid steps).  Among tiles giving
    # >= 2 steps prefer an even (or >= 8) grid so v7x's two TensorCores stay
    # balanced; fall back to MIN_TILE for tiny inputs (single step).
    cands = (MAX_TILE, 1024, 512, MIN_TILE)
    for t in cands:
        g = pl.cdiv(n, t)
        if g >= 2 and (g >= 8 or g % 2 == 0):
            return t
    for t in cands:
        if pl.cdiv(n, t) >= 2:
            return t
    return MIN_TILE


# --------------------------------------------------------------------------
# QuonvLayer.forward
# --------------------------------------------------------------------------
def quonv_layer(img, weights):
    bs, h, w, ch = img.shape
    assert ch == 1, "module's final reshape requires ch == 1"
    f, st = FILTER_SIZE, STRIDE
    h_out = (h - f) // st + 1
    w_out = (w - f) // st + 1

    # raster scanner == identity patch ordering
    # TODO(synk): 'random' / 'ptrans' / 'zigzag' scanners not implemented.
    # TODO(synk): fuse the unfold into the kernel (overlapping image row-strip
    #             blocks need element-offset/manual DMA) to drop this patches
    #             HBM round trip; on v5e the patches could also be DMA'd bf16.
    patches_t = _convolve_t(img).astype(jnp.float32)     # (4, N) feature-major
    n = patches_t.shape[1]

    u = _build_unitary(weights).astype(jnp.bfloat16)     # (16, 16) bf16 for the MXU

    tile = _choose_tile(n)
    chunk = min(CHUNK, tile)
    grid = pl.cdiv(n, tile)            # ragged last block: columns are independent,
                                       # garbage lanes never touch valid output columns

    cost = pl.CostEstimate(
        flops=int(n) * (2 * DIM * DIM + 2 * OUT_CHANNELS * DIM + 8 * DIM),
        transcendentals=int(n) * 2 * WIRES,
        bytes_accessed=int(n) * (WIRES + OUT_CHANNELS) * 4 + DIM * DIM * 2,
    )

    out = pl.pallas_call(
        functools.partial(quonv_kernel, chunk=chunk, n_chunks=tile // chunk),
        out_shape=jax.ShapeDtypeStruct((OUT_CHANNELS, n), jnp.float32),
        grid=(grid,),
        in_specs=[
            pl.BlockSpec((WIRES, tile), lambda i: (0, i)),
            # Constant operand: constant index_map -> DMA'd once, not per step.
            pl.BlockSpec((DIM, DIM), lambda i: (0, 0)),
        ],
        out_specs=pl.BlockSpec((OUT_CHANNELS, tile), lambda i: (0, i)),
        compiler_params=pltpu.CompilerParams(
            dimension_semantics=("parallel",),
            vmem_limit_bytes=32 * 1024 * 1024),
        cost_estimate=cost,
    )(patches_t, u)

    # (4, N) -> (N, 4) -> (bs, h_out, w_out, 4); N ordered (b, io, jo) for ch==1.
    # TODO(synk): channel-first (4, N) is the kernel-native layout; a fused
    #             consumer could skip this extra transpose pass over the output.
    return out.T.reshape(bs, h_out, w_out, OUT_CHANNELS)


# --------------------------------------------------------------------------
# Pure-numpy reference: independent patch extraction (explicit loops encoding
# the torch unfold/transpose semantics) + independent statevector build.
# --------------------------------------------------------------------------
def _build_circuit_matrices_np(weights_np):
    n, dim = WIRES, DIM
    eye2 = np.eye(2)

    def ry(t):
        c, s = np.cos(t / 2.0), np.sin(t / 2.0)
        return np.array([[c, -s], [s, c]])

    def on_wire(g, w):
        mats = [eye2] * n
        mats[w] = g
        return functools.reduce(np.kron, mats)

    U = np.eye(dim)
    for l in range(weights_np.shape[0]):
        layer = np.eye(dim)
        for i in range(n):
            layer = on_wire(ry(weights_np[l, i]), i) @ layer
        for i in range(n):
            layer = np.asarray(_cnot_np(i, (i + 1) % n), np.float64) @ layer
        U = layer @ U

    Z = np.array([[1.0 - 2.0 * ((k >> (n - 1 - i)) & 1) for i in range(n)]
                  for k in range(dim)])
    return U, Z


def _reference_forward(img, weights):
    img = np.asarray(img, np.float64)
    weights = np.asarray(weights, np.float64)
    bs, h, w, ch = img.shape
    f, st = FILTER_SIZE, STRIDE
    h_out = (h - f) // st + 1
    w_out = (w - f) // st + 1

    # torch: unfold(2,f,s) -> unfold(1,f,s) -> transpose(2,3) -> reshape(-1, f*f)
    # row order (b, io, c, jo); column order (wi, hi)
    rows = []
    for b in range(bs):
        for io in range(h_out):
            for c in range(ch):
                for jo in range(w_out):
                    rows.append([img[b, io * st + hi, jo * st + wi, c]
                                 for wi in range(f) for hi in range(f)])
    patches = np.asarray(rows)

    U, Z = _build_circuit_matrices_np(weights)
    cth = np.cos(0.5 * np.pi * patches)
    sth = np.sin(0.5 * np.pi * patches)
    npatch = patches.shape[0]
    amp = np.ones((npatch, 1))
    for wi in range(WIRES):
        vec = np.stack([cth[:, wi], sth[:, wi]], axis=-1)
        amp = (amp[:, :, None] * vec[:, None, :]).reshape(npatch, -1)
    psi = amp @ U.T
    return (psi ** 2) @ Z


if __name__ == "__main__":
    key = jax.random.PRNGKey(0)
    k_img, k_w, k_img2 = jax.random.split(key, 3)
    weights = jax.random.uniform(k_w, (N_LAYERS, WIRES), jnp.float32,
                                 minval=0.0, maxval=2.0 * np.pi)
    fwd = jax.jit(quonv_layer)          # wrapper is fully traceable

    # Case 1: small image -> tile=256, grid=2, ragged final block.
    img = jax.random.uniform(k_img, (2, 16, 16, 1), jnp.float32)
    out = jax.block_until_ready(fwd(img, weights))
    assert out.shape == (2, 15, 15, OUT_CHANNELS)
    ref = _reference_forward(np.asarray(img), np.asarray(weights))
    err = np.max(np.abs(np.asarray(out).reshape(-1, OUT_CHANNELS) - ref))
    assert err < 2e-2, f"max abs error {err}"

    # Case 2: larger image -> 2048-lane tile, 4-chunk in-kernel loop, even grid.
    img2 = jax.random.uniform(k_img2, (2, 64, 64, 1), jnp.float32)
    out2 = jax.block_until_ready(fwd(img2, weights))
    assert out2.shape == (2, 63, 63, OUT_CHANNELS)
    ref2 = _reference_forward(np.asarray(img2), np.asarray(weights))
    err2 = np.max(np.abs(np.asarray(out2).reshape(-1, OUT_CHANNELS) - ref2))
    assert err2 < 2e-2, f"max abs error {err2}"

    print("KERNEL_OK")
</pallas_src>

<mosaic_0001>
module attributes {stable_mosaic.version = 11 : i64} {
  func.func @quonv_kernel(%arg0: i32, %arg1: memref<4x256xf32, #tpu.memory_space<vmem>>, %arg2: memref<16x16xbf16, #tpu.memory_space<vmem>>, %arg3: memref<4x256xf32, #tpu.memory_space<vmem>>) attributes {dimension_semantics = [#tpu.dimension_semantics<parallel>], iteration_bounds = array<i64: 2>, scalar_prefetch = 0 : i64, scratch_operands = 0 : i64, tpu.core_type = #tpu.core_type<tc>, window_params = [{transform_indices = @transform_0, window_bounds = array<i64: 4, 256>}, {pipeline_mode = #tpu.pipeline_mode<synchronous>, transform_indices = @transform_1, window_bounds = array<i64: 16, 16>}, {transform_indices = @transform_2, window_bounds = array<i64: 4, 256>}]} {
    %c0 = arith.constant 0 : index
    %c0_0 = arith.constant 0 : index
    %0 = vector.load %arg2[%c0, %c0_0] : memref<16x16xbf16, #tpu.memory_space<vmem>>, vector<16x16xbf16>
    %1 = tpu.iota {dimensions = array<i32: 0>} : vector<16x1xi32>
    %c3_i32 = arith.constant 3 : i32
    %2 = vector.broadcast %c3_i32 : i32 to vector<16x1xi32>
    %3 = arith.shrsi %1, %2 : vector<16x1xi32>
    %c1_i32 = arith.constant 1 : i32
    %4 = vector.broadcast %c1_i32 : i32 to vector<16x1xi32>
    %5 = arith.andi %3, %4 : vector<16x1xi32>
    %c2_i32 = arith.constant 2 : i32
    %6 = vector.broadcast %c2_i32 : i32 to vector<16x1xi32>
    %7 = arith.shrsi %1, %6 : vector<16x1xi32>
    %c1_i32_1 = arith.constant 1 : i32
    %8 = vector.broadcast %c1_i32_1 : i32 to vector<16x1xi32>
    %9 = arith.andi %7, %8 : vector<16x1xi32>
    %c1_i32_2 = arith.constant 1 : i32
    %10 = vector.broadcast %c1_i32_2 : i32 to vector<16x1xi32>
    %11 = arith.shrsi %1, %10 : vector<16x1xi32>
    %c1_i32_3 = arith.constant 1 : i32
    %12 = vector.broadcast %c1_i32_3 : i32 to vector<16x1xi32>
    %13 = arith.andi %11, %12 : vector<16x1xi32>
    %c0_i32 = arith.constant 0 : i32
    %14 = vector.broadcast %c0_i32 : i32 to vector<16x1xi32>
    %15 = arith.shrsi %1, %14 : vector<16x1xi32>
    %c1_i32_4 = arith.constant 1 : i32
    %16 = vector.broadcast %c1_i32_4 : i32 to vector<16x1xi32>
    %17 = arith.andi %15, %16 : vector<16x1xi32>
    %18 = arith.sitofp %5 : vector<16x1xi32> to vector<16x1xf32>
    %cst = arith.constant 2.000000e+00 : f32
    %19 = vector.broadcast %cst : f32 to vector<16x1xf32>
    %20 = arith.mulf %19, %18 : vector<16x1xf32>
    %cst_5 = arith.constant 1.000000e+00 : f32
    %21 = vector.broadcast %cst_5 : f32 to vector<16x1xf32>
    %22 = arith.subf %21, %20 : vector<16x1xf32>
    %23 = arith.sitofp %9 : vector<16x1xi32> to vector<16x1xf32>
    %cst_6 = arith.constant 2.000000e+00 : f32
    %24 = vector.broadcast %cst_6 : f32 to vector<16x1xf32>
    %25 = arith.mulf %24, %23 : vector<16x1xf32>
    %cst_7 = arith.constant 1.000000e+00 : f32
    %26 = vector.broadcast %cst_7 : f32 to vector<16x1xf32>
    %27 = arith.subf %26, %25 : vector<16x1xf32>
    %28 = arith.sitofp %13 : vector<16x1xi32> to vector<16x1xf32>
    %cst_8 = arith.constant 2.000000e+00 : f32
    %29 = vector.broadcast %cst_8 : f32 to vector<16x1xf32>
    %30 = arith.mulf %29, %28 : vector<16x1xf32>
    %cst_9 = arith.constant 1.000000e+00 : f32
    %31 = vector.broadcast %cst_9 : f32 to vector<16x1xf32>
    %32 = arith.subf %31, %30 : vector<16x1xf32>
    %33 = arith.sitofp %17 : vector<16x1xi32> to vector<16x1xf32>
    %cst_10 = arith.constant 2.000000e+00 : f32
    %34 = vector.broadcast %cst_10 : f32 to vector<16x1xf32>
    %35 = arith.mulf %34, %33 : vector<16x1xf32>
    %cst_11 = arith.constant 1.000000e+00 : f32
    %36 = vector.broadcast %cst_11 : f32 to vector<16x1xf32>
    %37 = arith.subf %36, %35 : vector<16x1xf32>
    %c0_i32_12 = arith.constant 0 : i32
    %c256_i32 = arith.constant 256 : i32
    %38 = arith.muli %c0_i32_12, %c256_i32 : i32
    %39 = tpu.assume_multiple %38, 256 : i32
    %c0_13 = arith.constant 0 : index
    %40 = arith.index_cast %39 : i32 to index
    %41 = vector.load %arg1[%c0_13, %40] : memref<4x256xf32, #tpu.memory_space<vmem>>, vector<4x256xf32>
    %cst_14 = arith.constant 1.57079637 : f32
    %42 = vector.broadcast %cst_14 : f32 to vector<4x256xf32>
    %43 = arith.mulf %42, %41 : vector<4x256xf32>
    %cst_15 = arith.constant 1.57079637 : f32
    %44 = vector.broadcast %cst_15 : f32 to vector<4x256xf32>
    %45 = arith.subf %43, %44 : vector<4x256xf32>
    %46 = tpu.concatenate %43, %45 in 0 : vector<4x256xf32>, vector<4x256xf32> -> vector<8x256xf32>
    %47 = math.cos %46 : vector<8x256xf32>
    %c1_i32_16 = arith.constant 1 : i32
    %48 = vector.broadcast %c1_i32_16 : i32 to vector<16x1xi32>
    %49 = arith.cmpi eq, %5, %48 : vector<16x1xi32>
    %50 = vector.extract_strided_slice %47 {offsets = [4, 0], sizes = [1, 256], strides = [1, 1]} : vector<8x256xf32> to vector<1x256xf32>
    %51 = vector.extract_strided_slice %47 {offsets = [0, 0], sizes = [1, 256], strides = [1, 1]} : vector<8x256xf32> to vector<1x256xf32>
    %52 = vector.shape_cast %49 : vector<16x1xi1> to vector<16x1xi1>
    %53 = vector.broadcast %52 : vector<16x1xi1> to vector<16x256xi1>
    %54 = vector.shape_cast %50 : vector<1x256xf32> to vector<1x256xf32>
    %55 = vector.broadcast %54 : vector<1x256xf32> to vector<16x256xf32>
    %56 = vector.shape_cast %51 : vector<1x256xf32> to vector<1x256xf32>
    %57 = vector.broadcast %56 : vector<1x256xf32> to vector<16x256xf32>
    %58 = arith.select %53, %55, %57 : vector<16x256xi1>, vector<16x256xf32>
    %c1_i32_17 = arith.constant 1 : i32
    %59 = vector.broadcast %c1_i32_17 : i32 to vector<16x1xi32>
    %60 = arith.cmpi eq, %9, %59 : vector<16x1xi32>
    %61 = vector.extract_strided_slice %47 {offsets = [5, 0], sizes = [1, 256], strides = [1, 1]} : vector<8x256xf32> to vector<1x256xf32>
    %62 = vector.extract_strided_slice %47 {offsets = [1, 0], sizes = [1, 256], strides = [1, 1]} : vector<8x256xf32> to vector<1x256xf32>
    %63 = vector.shape_cast %60 : vector<16x1xi1> to vector<16x1xi1>
    %64 = vector.broadcast %63 : vector<16x1xi1> to vector<16x256xi1>
    %65 = vector.shape_cast %61 : vector<1x256xf32> to vector<1x256xf32>
    %66 = vector.broadcast %65 : vector<1x256xf32> to vector<16x256xf32>
    %67 = vector.shape_cast %62 : vector<1x256xf32> to vector<1x256xf32>
    %68 = vector.broadcast %67 : vector<1x256xf32> to vector<16x256xf32>
    %69 = arith.select %64, %66, %68 : vector<16x256xi1>, vector<16x256xf32>
    %70 = arith.mulf %58, %69 : vector<16x256xf32>
    %c1_i32_18 = arith.constant 1 : i32
    %71 = vector.broadcast %c1_i32_18 : i32 to vector<16x1xi32>
    %72 = arith.cmpi eq, %13, %71 : vector<16x1xi32>
    %73 = vector.extract_strided_slice %47 {offsets = [6, 0], sizes = [1, 256], strides = [1, 1]} : vector<8x256xf32> to vector<1x256xf32>
    %74 = vector.extract_strided_slice %47 {offsets = [2, 0], sizes = [1, 256], strides = [1, 1]} : vector<8x256xf32> to vector<1x256xf32>
    %75 = vector.shape_cast %72 : vector<16x1xi1> to vector<16x1xi1>
    %76 = vector.broadcast %75 : vector<16x1xi1> to vector<16x256xi1>
    %77 = vector.shape_cast %73 : vector<1x256xf32> to vector<1x256xf32>
    %78 = vector.broadcast %77 : vector<1x256xf32> to vector<16x256xf32>
    %79 = vector.shape_cast %74 : vector<1x256xf32> to vector<1x256xf32>
    %80 = vector.broadcast %79 : vector<1x256xf32> to vector<16x256xf32>
    %81 = arith.select %76, %78, %80 : vector<16x256xi1>, vector<16x256xf32>
    %82 = arith.mulf %70, %81 : vector<16x256xf32>
    %c1_i32_19 = arith.constant 1 : i32
    %83 = vector.broadcast %c1_i32_19 : i32 to vector<16x1xi32>
    %84 = arith.cmpi eq, %17, %83 : vector<16x1xi32>
    %85 = vector.extract_strided_slice %47 {offsets = [7, 0], sizes = [1, 256], strides = [1, 1]} : vector<8x256xf32> to vector<1x256xf32>
    %86 = vector.extract_strided_slice %47 {offsets = [3, 0], sizes = [1, 256], strides = [1, 1]} : vector<8x256xf32> to vector<1x256xf32>
    %87 = vector.shape_cast %84 : vector<16x1xi1> to vector<16x1xi1>
    %88 = vector.broadcast %87 : vector<16x1xi1> to vector<16x256xi1>
    %89 = vector.shape_cast %85 : vector<1x256xf32> to vector<1x256xf32>
    %90 = vector.broadcast %89 : vector<1x256xf32> to vector<16x256xf32>
    %91 = vector.shape_cast %86 : vector<1x256xf32> to vector<1x256xf32>
    %92 = vector.broadcast %91 : vector<1x256xf32> to vector<16x256xf32>
    %93 = arith.select %88, %90, %92 : vector<16x256xi1>, vector<16x256xf32>
    %94 = arith.mulf %82, %93 : vector<16x256xf32>
    %95 = arith.truncf %94 : vector<16x256xf32> to vector<16x256xbf16>
    %cst_20 = arith.constant dense<0.000000e+00> : vector<16x256xf32>
    %96 = tpu.matmul %0, %95, %cst_20 {dimension_numbers = #tpu.dot_dimension_numbers<[1], [0], [0], [1], [0, 0, 1, 1], [], []>} : vector<16x16xbf16>, vector<16x256xbf16>, vector<16x256xf32> -> vector<16x256xf32>
    %97 = arith.mulf %96, %96 : vector<16x256xf32>
    %98 = vector.broadcast %22 : vector<16x1xf32> to vector<16x256xf32>
    %99 = arith.mulf %97, %98 : vector<16x256xf32>
    %cst_21 = arith.constant dense<0.000000e+00> : vector<256xf32>
    %100 = vector.multi_reduction <add>, %99, %cst_21 [0] : vector<16x256xf32> to vector<256xf32>
    %101 = vector.shape_cast %100 : vector<256xf32> to vector<1x256xf32>
    %102 = vector.broadcast %27 : vector<16x1xf32> to vector<16x256xf32>
    %103 = arith.mulf %97, %102 : vector<16x256xf32>
    %cst_22 = arith.constant dense<0.000000e+00> : vector<256xf32>
    %104 = vector.multi_reduction <add>, %103, %cst_22 [0] : vector<16x256xf32> to vector<256xf32>
    %105 = vector.shape_cast %104 : vector<256xf32> to vector<1x256xf32>
    %106 = vector.broadcast %32 : vector<16x1xf32> to vector<16x256xf32>
    %107 = arith.mulf %97, %106 : vector<16x256xf32>
    %cst_23 = arith.constant dense<0.000000e+00> : vector<256xf32>
    %108 = vector.multi_reduction <add>, %107, %cst_23 [0] : vector<16x256xf32> to vector<256xf32>
    %109 = vector.shape_cast %108 : vector<256xf32> to vector<1x256xf32>
    %110 = vector.broadcast %37 : vector<16x1xf32> to vector<16x256xf32>
    %111 = arith.mulf %97, %110 : vector<16x256xf32>
    %cst_24 = arith.constant dense<0.000000e+00> : vector<256xf32>
    %112 = vector.multi_reduction <add>, %111, %cst_24 [0] : vector<16x256xf32> to vector<256xf32>
    %113 = vector.shape_cast %112 : vector<256xf32> to vector<1x256xf32>
    %114 = tpu.concatenate %101, %105, %109, %113 in 0 : vector<1x256xf32>, vector<1x256xf32>, vector<1x256xf32>, vector<1x256xf32> -> vector<4x256xf32>
    %c0_25 = arith.constant 0 : index
    %115 = arith.index_cast %39 : i32 to index
    %116 = vector.load %arg3[%c0_25, %115] : memref<4x256xf32, #tpu.memory_space<vmem>>, vector<4x256xf32>
    tpu.vector_store %arg3[%c0_25, %115], %114 {strides = array<i32>} : memref<4x256xf32, #tpu.memory_space<vmem>>, vector<4x256xf32>,
    %c1_i32_26 = arith.constant 1 : i32
    return
  }
  func.func @transform_0(%arg0: i32) -> (i32, i32) {
    %c0_i32 = arith.constant 0 : i32
    %c0_i32_0 = arith.constant 0 : i32
    return %c0_i32, %arg0 : i32, i32
  }
  func.func @transform_1(%arg0: i32) -> (i32, i32) {
    %c0_i32 = arith.constant 0 : i32
    %c0_i32_0 = arith.constant 0 : i32
    %c0_i32_1 = arith.constant 0 : i32
    return %c0_i32, %c0_i32_0 : i32, i32
  }
  func.func @transform_2(%arg0: i32) -> (i32, i32) {
    %c0_i32 = arith.constant 0 : i32
    %c0_i32_0 = arith.constant 0 : i32
    return %c0_i32, %arg0 : i32, i32
  }
}

</mosaic_0001>

<llo_original>
// kernel: quonv_layer.1
$region0: #{quonv_layer.1}
  #allocation0 [shape = 'u32[]', space=smem, size = 0x4, offset = 0x4, fixed_abs, tag = 'smem constant byte address 0x4 - core index']
  #allocation1 [shape = 'u32[144,128]{1,0:T(1,128)}', space=vmem, size = 0x12000, scoped, tag = 'internal scratch']
  %s0 = inlined_call_operand.vmem [shape: f32[4,450], index: 0, kind: input, shape index: {}]
  %s1 = inlined_call_operand.vmem [shape: bf16[16,16], index: 1, kind: input, shape index: {}]
  %s2 = inlined_call_operand.vmem [shape: f32[4,450], index: 2, kind: output, shape index: {}]
  %s3 = sld [smem:[#allocation0]]
  $region41: #{quonv_layer.1} parent=0
    _
  %s5 = ssub.s32 1, %s3
  %s6 = scalar_select 0, %s5, %s3
  loop: start=0, step=1, limit=4
  $region2: #{quonv_layer.1} parent=0 // loop_pre_header
    _
  $region3: #{quonv_layer.1} parent=0 // loop_header
    %s8 = sphi 0, %s12
    %p9 = scmp.ge.s32.totalorder %s8, 4
    %s18 = sphi 0, %s20
    %s21 = sphi 0, %s18
    %s22 = sphi 0, %s21
    %s38 = sphi 0, %s22
    %s42 = sphi 0, %s42
    %s44 = sphi 0, %s42
    %s45 = sphi 0, %s44
    %s59 = sphi 0, %s45
    %s65 = sphi 0, %s67
    %s68 = sphi 0, %s65
    %s69 = sphi 0, %s68
    %s85 = sphi 0, %s69
  $region4: #{quonv_layer.1} parent=0 // loop_header_branch
    %11 = sbr.rel (%p9) target = $region8
  $region5: #{quonv_layer.1} parent=0 // loop_body
    %s13 = ssub.s32 %s8, 1
    %s14 = ssub.s32 %s8, 2
    %s15 = sadd.s32 %s8, 1
    %s16 = ssub.s32 %s8, %s15
    %p17 = scmp.eq.s32.totalorder %s16, 0
    %s19 = sadd.s32 %s18, 1
    %s20 = scalar_select %p17, %s18, %s19
    %p23 = pneg %p17
    %p24 = scmp.eq.s32.totalorder %s8, 1
    %p25 = por %p23, %p24
    %p26 = scmp.ne.s32.totalorder %s18, %s21
    %p27 = scmp.eq.s32.totalorder %s8, 0
    %p28 = por %p26, %p27
    %p29 = scmp.ne.s32.totalorder %s18, %s21
    %p30 = scmp.eq.s32.totalorder %s13, 1
    %p31 = por %p29, %p30
    %p32 = scmp.ne.s32.totalorder %s21, %s22
    %p33 = scmp.eq.s32.totalorder %s13, 0
    %p34 = por %p32, %p33
    %p35 = scmp.ne.s32.totalorder %s21, %s22
    %p36 = scmp.eq.s32.totalorder %s14, 1
    %p37 = por %p35, %p36
    %p39 = scmp.ne.s32.totalorder %s22, %s38
    %p40 = scmp.eq.s32.totalorder %s14, 0
    %p41 = por %p39, %p40
    %s43 = sadd.s32 %s42, 1
    %p46 = scmp.eq.s32.totalorder %s8, 1
    %p47 = scmp.ne.s32.totalorder %s42, %s44
    %p48 = scmp.eq.s32.totalorder %s8, 0
    %p49 = por %p47, %p48
    %p50 = scmp.ne.s32.totalorder %s42, %s44
    %p51 = scmp.eq.s32.totalorder %s13, 1
    %p52 = por %p50, %p51
    %p53 = scmp.ne.s32.totalorder %s44, %s45
    %p54 = scmp.eq.s32.totalorder %s13, 0
    %p55 = por %p53, %p54
    %p56 = scmp.ne.s32.totalorder %s44, %s45
    %p57 = scmp.eq.s32.totalorder %s14, 1
    %p58 = por %p56, %p57
    %p60 = scmp.ne.s32.totalorder %s45, %s59
    %p61 = scmp.eq.s32.totalorder %s14, 0
    %p62 = por %p60, %p61
    %s63 = ssub.s32 %s8, %s15
    %p64 = scmp.eq.s32.totalorder %s63, 0
    %s66 = sadd.s32 %s65, 1
    %s67 = scalar_select %p64, %s65, %s66
    %p70 = pneg %p64
    %p71 = scmp.eq.s32.totalorder %s8, 1
    %p72 = por %p70, %p71
    %p73 = scmp.ne.s32.totalorder %s65, %s68
    %p74 = scmp.eq.s32.totalorder %s8, 0
    %p75 = por %p73, %p74
    %p76 = scmp.ne.s32.totalorder %s65, %s68
    %p77 = scmp.eq.s32.totalorder %s13, 1
    %p78 = por %p76, %p77
    %p79 = scmp.ne.s32.totalorder %s68, %s69
    %p80 = scmp.eq.s32.totalorder %s13, 0
    %p81 = por %p79, %p80
    %p82 = scmp.ne.s32.totalorder %s68, %s69
    %p83 = scmp.eq.s32.totalorder %s14, 1
    %p84 = por %p82, %p83
    %p86 = scmp.ne.s32.totalorder %s69, %s85
    %p87 = scmp.eq.s32.totalorder %s14, 0
    %p88 = por %p86, %p87
    %p89 = scmp.le.s32.totalorder 1, %s8
    %p90 = scmp.lt.s32.totalorder %s8, 3
    %p91 = pnand %p89, %p90
    %p92 = pneg %p91
    // Predicated region
    $region9: #{quonv_layer.1} parent=5 // pred_check
      _
    $region10: #{quonv_layer.1} parent=5 // pred_check_branch
      %94 = sbr.rel (%p91) target = $region12
    $region11: #{quonv_layer.1} parent=5 // pred_region
      %s95 = ssub.s32 %s8, 1
      // Predicated region
      $region13: #{quonv_layer.1} parent=11 // pred_check
        %p96 = pneg %p55
      $region14: #{quonv_layer.1} parent=11 // pred_check_branch
        %98 = sbr.rel (%p96) target = $region16
      $region15: #{quonv_layer.1} parent=11 // pred_region
        _
      $region16: #{quonv_layer.1} parent=11 // pred_fallthru
        _
    $region12: #{quonv_layer.1} parent=5 // pred_fallthru
      _
    %p99 = scmp.lt.s32.totalorder %s8, 2
    // Predicated region
    $region17: #{quonv_layer.1} parent=5 // pred_check
      %p100 = pneg %p99
    $region18: #{quonv_layer.1} parent=5 // pred_check_branch
      %102 = sbr.rel (%p100) target = $region20
    $region19: #{quonv_layer.1} parent=5 // pred_region
      // Predicated region
      $region21: #{quonv_layer.1} parent=19 // pred_check
        %p103 = pneg %p28
      $region22: #{quonv_layer.1} parent=19 // pred_check_branch
        %105 = sbr.rel (%p103) target = $region24
      $region23: #{quonv_layer.1} parent=19 // pred_region
        %s106 = smul.u32 2, %s8
        %p107 = scmp.lt.s32.totalorder %s106, 3
        %s108 = scalar_select %p107, %s106, 3
        %s109 = smul.addr %s108, 4
        %s110 = scalar_lea.vmem %s0, %s109
        %s111 = smul.u32 2, %s8
      $region24: #{quonv_layer.1} parent=19 // pred_fallthru
        _
    $region20: #{quonv_layer.1} parent=5 // pred_fallthru
      _
    %p112 = scmp.le.s32.totalorder 1, %s8
    %p113 = scmp.lt.s32.totalorder %s8, 3
    %p114 = pnand %p112, %p113
    %p115 = pneg %p114
    // Predicated region
    $region25: #{quonv_layer.1} parent=5 // pred_check
      _
    $region26: #{quonv_layer.1} parent=5 // pred_check_branch
      %117 = sbr.rel (%p114) target = $region28
    $region27: #{quonv_layer.1} parent=5 // pred_region
      %s118 = ssub.s32 %s8, 1
      %s119 = smul.u32 2, %s13
      %p120 = scmp.lt.s32.totalorder %s119, 3
      %s121 = scalar_select %p120, %s119, 3
      %s122 = smul.addr %s121, 4
      %s123 = scalar_lea.vmem %s0, %s122
      %p124 = pneg %p34
      %p125 = pneg %p31
      %p126 = pneg %p55
      %p127 = pneg %p52
      %p128 = pneg %p81
      %p129 = pneg %p78
      %s130 = smul.u32 2, %s13
      %p131 = scmp.lt.s32.totalorder %s130, 3
      %s132 = scalar_select %p131, %s130, 3
      %s133 = smul.addr %s132, 4
      %s134 = scalar_lea.vmem %s2, %s133
      %s135 = smul.u32 2, %s13
      %p136 = scmp.lt.s32.totalorder %s135, 3
      %s137 = scalar_select %p136, %s135, 3
      %s138 = smul.addr %s137, 4
      %s139 = scalar_lea.vmem %s0, %s138
      %s140 = smul.u32 2, %s13
      %s141 = smul.u32 2, %s13
      %p142 = scmp.lt.s32.totalorder %s141, 3
      %s143 = scalar_select %p142, %s141, 3
      %s144 = smul.addr %s143, 4
      %s145 = scalar_lea.vmem %s2, %s144
      %s146 = smul.u32 2, %s13
      %v148 = vld [vmem:[%s1] sm:$0xf]
      %v149 = vld [vmem:[%s1 + $0x4] sm:$0xf]
      %v150 = vlaneseq
      %v151 = vshrl.u32 %v150, 7
      %v152 = vadd.s32 %v151, 8
      %v153 = vshra.s32 %v151, 3
      %v154 = vshra.s32 %v152, 3
      %v155 = vand.u32 %v153, 1
      %v156 = vand.u32 %v154, 1
      %v157 = vshra.s32 %v151, 2
      %v158 = vshra.s32 %v152, 2
      %v159 = vand.u32 %v157, 1
      %v160 = vand.u32 %v158, 1
      %v161 = vshra.s32 %v151, 1
      %v162 = vshra.s32 %v152, 1
      %v163 = vand.u32 %v161, 1
      %v164 = vand.u32 %v162, 1
      %v165 = vand.u32 %v151, 1
      %v166 = vand.u32 %v152, 1
      %v167 = vcvt.s32.f32 %v155
      %v168 = vcvt.s32.f32 %v156
      %v169 = vmul.f32 %v167, 2.0
      %v170 = vmul.f32 %v168, 2.0
      %v171 = vsub.f32 1.0, %v169
      %v172 = vsub.f32 1.0, %v170
      %v173 = vcvt.s32.f32 %v159
      %v174 = vcvt.s32.f32 %v160
      %v175 = vmul.f32 %v173, 2.0
      %v176 = vmul.f32 %v174, 2.0
      %v177 = vsub.f32 1.0, %v175
      %v178 = vsub.f32 1.0, %v176
      %v179 = vcvt.s32.f32 %v163
      %v180 = vcvt.s32.f32 %v164
      %v181 = vmul.f32 %v179, 2.0
      %v182 = vmul.f32 %v180, 2.0
      %v183 = vsub.f32 1.0, %v181
      %v184 = vsub.f32 1.0, %v182
      %v185 = vcvt.s32.f32 %v165
      %v186 = vcvt.s32.f32 %v166
      %v187 = vmul.f32 %v185, 2.0
      %v188 = vmul.f32 %v186, 2.0
      %v189 = vsub.f32 1.0, %v187
      %v190 = vsub.f32 1.0, %v188
      %v191 = vld [vmem:[%s139] sm:$0xff]
      %v192 = vmul.f32 %v191, 1.5707964
      %v193 = vsub.f32 %v192, 1.5707964
      %v195 = vcombine.high %v192, %v192
      %v198 = vcombine.low %v193, %v193
      %vm200 = vcmask 1043456
      %v201 = vsel %vm200, %v192, %v198
      %v202 = vsel %vm200, %v195, %v193
      %v203 = vand.u32 2147483647, %v201
      %vm204 = vcmp.le.f32.partialorder %v203, 0.7853982
      %vm205 = vcmp.lt.s32.totalorder %v201, 0
      %v206 = vand.u32 %v201, 2139095040
      %v207 = vshrl.u32 %v206, 23
      %v208 = vsub.s32 %v207, 127
      %v209 = vand.u32 2147483647, %v201
      %v210 = vand.u32 %v209, 8388607
      %v211 = vor.u32 %v210, 8388608
      %v212 = vsub.s32 0, %v211
      %v213 = vadd.s32 %v208, 1
      %vm214 = vcmp.gt.s32.totalorder %v213, 0
      %v215 = vsel %vm214, %v213, 0
      %v216 = vshrl.u32 %v215, 5
      %v217 = vand.u32 %v215, 31
      %v218 = vsub.s32 32, %v217
      %v219 = vshrl.u32 683565275, %v218
      %v220 = vshll.u32 683565275, %v217
      %v221 = vshrl.u32 2475754826, %v218
      %v222 = vor.u32 %v220, %v221
      %v223 = vshll.u32 2475754826, %v217
      %v224 = vshrl.u32 2131351028, %v218
      %v225 = vor.u32 %v223, %v224
      %v226 = vshll.u32 2131351028, %v217
      %v227 = vshrl.u32 2102212464, %v218
      %v228 = vor.u32 %v226, %v227
      %v229 = vshll.u32 2102212464, %v217
      %v230 = vshrl.u32 920167782, %v218
      %v231 = vor.u32 %v229, %v230
      %v232 = vshll.u32 920167782, %v217
      %v233 = vshrl.u32 1326507024, %v218
      %v234 = vor.u32 %v232, %v233
      %vm235 = vcmp.lt.s32.totalorder %v216, 1
      %vm236 = vcmp.lt.s32.totalorder %v216, 2
      %vm237 = vcmp.lt.s32.totalorder %v216, 3
      %vm238 = vcmp.lt.s32.totalorder %v216, 4
      %v239 = vsel %vm235, %v219, %v222
      %v240 = vsel %vm238, %v228, 2102212464
      %v241 = vsel %vm237, %v225, %v240
      %v242 = vsel %vm236, %v239, %v241
      %v243 = vsel %vm235, %v222, %v225
      %v244 = vsel %vm238, %v231, 920167782
      %v245 = vsel %vm237, %v228, %v244
      %v246 = vsel %vm236, %v243, %v245
      %v247 = vsel %vm235, %v225, %v228
      %v248 = vsel %vm238, %v234, 1326507024
      %v249 = vsel %vm237, %v231, %v248
      %v250 = vsel %vm236, %v247, %v249
      %v251 = vshll.u32 %v211, 8
      %v252 = vmul.u32.u64.compose %v251, %v250
      %v253 = vextract.low.u32 %v252
      %v254 = vextract.high.u32 %v252
      %v255 = vmul.u32.u64.compose %v251, %v246
      %v256 = vextract.low.u32 %v255
      %v257 = vextract.high.u32 %v255
      %v258 = vmul.u32 %v251, %v242
      %v259 = vadd.s32 %v254, %v256
      %vm260 = vc.u32 %v254, %v256
      %v261 = vadd.s32 %v257, 1
      %v262 = vsel %vm260, %v261, %v257
      %v263 = vadd.s32 %v258, %v262
      %v264 = vadd.s32 %v263, 536870912
      %v265 = vshrl.u32 %v264, 30
      %v266 = vshll.u32 %v265, 30
      %v267 = vsub.s32 %v263, %v266
      %vm268 = vcmp.lt.s32.totalorder %v267, 0
      %v269 = vsub.s32 0, %v267
      %v270 = vsel %vm268, %v269, %v267
      %v271 = vclz %v270
      %v272 = vsub.s32 %v271, 2
      %vm273 = vcmp.gt.s32.totalorder 0, %v272
      %v274 = vsel %vm273, 0, %v272
      %v275 = vsub.s32 32, %v274
      %v276 = vshll.u32 %v267, %v274
      %v277 = vshrl.u32 %v259, %v275
      %v278 = vor.u32 %v276, %v277
      %v279 = vsub.s32 4294967266, %v274
      %v280 = vadd.s32 %v279, 127
      %v281 = vshll.u32 %v280, 23
      %v282 = vor.u32 4788187, %v281
      %v283 = vand.u32 2147483647, %v282
      %v285 = vcvt.s32.f32 %v278
      %v286 = vmul.f32 %v285, %v283
      %v287 = vxor.u32 %v286, 2147483648
      %v288 = vsel %vm205, %v287, %v286
      %v289 = vsub.s32 4, %v265
      %v290 = vsel %vm205, %v289, %v265
      %v291 = vsel %vm204, %v201, %v288
      %v292 = vsel %vm204, 0, %v290
      %v293 = vcosq.f32.pop %v291
      %v294 = vsinq.f32.pop %v291
      %vm295 = vweird.f32 %v201
      %v296 = vand.u32 %v292, 3
      %vm297 = vcmp.lt.s32.totalorder %v296, 2
      %vm298 = vcmp.eq.s32.totalorder %v296, 0
      %v299 = vxor.u32 %v294, 2147483648
      %v300 = vsel %vm298, %v293, %v299
      %vm301 = vcmp.eq.s32.totalorder %v296, 2
      %v302 = vxor.u32 %v293, 2147483648
      %v303 = vsel %vm301, %v302, %v294
      %v304 = vsel %vm297, %v300, %v303
      %v305 = vsel %vm295, nan, %v304
      %v306 = vand.u32 2147483647, %v202
      %vm307 = vcmp.le.f32.partialorder %v306, 0.7853982
      %vm308 = vcmp.lt.s32.totalorder %v202, 0
      %v309 = vand.u32 %v202, 2139095040
      %v310 = vshrl.u32 %v309, 23
      %v311 = vsub.s32 %v310, 127
      %v312 = vand.u32 2147483647, %v202
      %v313 = vand.u32 %v312, 8388607
      %v314 = vor.u32 %v313, 8388608
      %v315 = vsub.s32 0, %v314
      %v316 = vadd.s32 %v311, 1
      %vm317 = vcmp.gt.s32.totalorder %v316, 0
      %v318 = vsel %vm317, %v316, 0
      %v319 = vshrl.u32 %v318, 5
      %v320 = vand.u32 %v318, 31
      %v321 = vsub.s32 32, %v320
      %v322 = vshrl.u32 683565275, %v321
      %v323 = vshll.u32 683565275, %v320
      %v324 = vshrl.u32 2475754826, %v321
      %v325 = vor.u32 %v323, %v324
      %v326 = vshll.u32 2475754826, %v320
      %v327 = vshrl.u32 2131351028, %v321
      %v328 = vor.u32 %v326, %v327
      %v329 = vshll.u32 2131351028, %v320
      %v330 = vshrl.u32 2102212464, %v321
      %v331 = vor.u32 %v329, %v330
      %v332 = vshll.u32 2102212464, %v320
      %v333 = vshrl.u32 920167782, %v321
      %v334 = vor.u32 %v332, %v333
      %v335 = vshll.u32 920167782, %v320
      %v336 = vshrl.u32 1326507024, %v321
      %v337 = vor.u32 %v335, %v336
      %vm338 = vcmp.lt.s32.totalorder %v319, 1
      %vm339 = vcmp.lt.s32.totalorder %v319, 2
      %vm340 = vcmp.lt.s32.totalorder %v319, 3
      %vm341 = vcmp.lt.s32.totalorder %v319, 4
      %v342 = vsel %vm338, %v322, %v325
      %v343 = vsel %vm341, %v331, 2102212464
      %v344 = vsel %vm340, %v328, %v343
      %v345 = vsel %vm339, %v342, %v344
      %v346 = vsel %vm338, %v325, %v328
      %v347 = vsel %vm341, %v334, 920167782
      %v348 = vsel %vm340, %v331, %v347
      %v349 = vsel %vm339, %v346, %v348
      %v350 = vsel %vm338, %v328, %v331
      %v351 = vsel %vm341, %v337, 1326507024
      %v352 = vsel %vm340, %v334, %v351
      %v353 = vsel %vm339, %v350, %v352
      %v354 = vshll.u32 %v314, 8
      %v355 = vmul.u32.u64.compose %v354, %v353
      %v356 = vextract.low.u32 %v355
      %v357 = vextract.high.u32 %v355
      %v358 = vmul.u32.u64.compose %v354, %v349
      %v359 = vextract.low.u32 %v358
      %v360 = vextract.high.u32 %v358
      %v361 = vmul.u32 %v354, %v345
      %v362 = vadd.s32 %v357, %v359
      %vm363 = vc.u32 %v357, %v359
      %v364 = vadd.s32 %v360, 1
      %v365 = vsel %vm363, %v364, %v360
      %v366 = vadd.s32 %v361, %v365
      %v367 = vadd.s32 %v366, 536870912
      %v368 = vshrl.u32 %v367, 30
      %v369 = vshll.u32 %v368, 30
      %v370 = vsub.s32 %v366, %v369
      %vm371 = vcmp.lt.s32.totalorder %v370, 0
      %v372 = vsub.s32 0, %v370
      %v373 = vsel %vm371, %v372, %v370
      %v374 = vclz %v373
      %v375 = vsub.s32 %v374, 2
      %vm376 = vcmp.gt.s32.totalorder 0, %v375
      %v377 = vsel %vm376, 0, %v375
      %v378 = vsub.s32 32, %v377
      %v379 = vshll.u32 %v370, %v377
      %v380 = vshrl.u32 %v362, %v378
      %v381 = vor.u32 %v379, %v380
      %v382 = vsub.s32 4294967266, %v377
      %v383 = vadd.s32 %v382, 127
      %v384 = vshll.u32 %v383, 23
      %v385 = vor.u32 4788187, %v384
      %v386 = vand.u32 2147483647, %v385
      %v388 = vcvt.s32.f32 %v381
      %v389 = vmul.f32 %v388, %v386
      %v390 = vxor.u32 %v389, 2147483648
      %v391 = vsel %vm308, %v390, %v389
      %v392 = vsub.s32 4, %v368
      %v393 = vsel %vm308, %v392, %v368
      %v394 = vsel %vm307, %v202, %v391
      %v395 = vsel %vm307, 0, %v393
      %v396 = vcosq.f32.pop %v394
      %v397 = vsinq.f32.pop %v394
      %vm398 = vweird.f32 %v202
      %v399 = vand.u32 %v395, 3
      %vm400 = vcmp.lt.s32.totalorder %v399, 2
      %vm401 = vcmp.eq.s32.totalorder %v399, 0
      %v402 = vxor.u32 %v397, 2147483648
      %v403 = vsel %vm401, %v396, %v402
      %vm404 = vcmp.eq.s32.totalorder %v399, 2
      %v405 = vxor.u32 %v396, 2147483648
      %v406 = vsel %vm404, %v405, %v397
      %v407 = vsel %vm400, %v403, %v406
      %v408 = vsel %vm398, nan, %v407
      %vm409 = vcmp.eq.s32.totalorder %v155, 1
      %vm410 = vcmp.eq.s32.totalorder %v156, 1
      %v411 = vsel %vm409, 1, 0
      %v412 = vsel %vm410, 1, 0
      %vm413 = vcmp.eq.s32.totalorder %v411, 1
      %vm414 = vcmp.eq.s32.totalorder %v412, 1
      %v415 = vlaneseq
      %v416 = vshrl.u32 %v415, 7
      %v417 = vsub.s32 4, %v416
      %v418 = vrot.slane %v305, %v417
      %v419 = vlaneseq
      %v420 = vshrl.u32 %v419, 7
      %v421 = vsub.s32 4, %v420
      %v422 = vrot.slane %v408, %v421
      %v423 = vlaneseq
      %v424 = vshrl.u32 %v423, 7
      %v425 = vsub.s32 0, %v424
      %v426 = vrot.slane %v305, %v425
      %v427 = vlaneseq
      %v428 = vshrl.u32 %v427, 7
      %v429 = vsub.s32 0, %v428
      %v430 = vrot.slane %v408, %v429
      %v431 = vsel %vm413, %v418, %v426
      %v432 = vsel %vm413, %v422, %v430
      %v433 = vsel %vm414, %v418, %v426
      %v434 = vsel %vm414, %v422, %v430
      %vm435 = vcmp.eq.s32.totalorder %v159, 1
      %vm436 = vcmp.eq.s32.totalorder %v160, 1
      %v437 = vsel %vm435, 1, 0
      %v438 = vsel %vm436, 1, 0
      %vm439 = vcmp.eq.s32.totalorder %v437, 1
      %vm440 = vcmp.eq.s32.totalorder %v438, 1
      %v441 = vlaneseq
      %v442 = vshrl.u32 %v441, 7
      %v443 = vsub.s32 5, %v442
      %v444 = vrot.slane %v305, %v443
      %v445 = vlaneseq
      %v446 = vshrl.u32 %v445, 7
      %v447 = vsub.s32 5, %v446
      %v448 = vrot.slane %v408, %v447
      %v449 = vlaneseq
      %v450 = vshrl.u32 %v449, 7
      %v451 = vsub.s32 1, %v450
      %v452 = vrot.slane %v305, %v451
      %v453 = vlaneseq
      %v454 = vshrl.u32 %v453, 7
      %v455 = vsub.s32 1, %v454
      %v456 = vrot.slane %v408, %v455
      %v457 = vsel %vm439, %v444, %v452
      %v458 = vsel %vm439, %v448, %v456
      %v459 = vsel %vm440, %v444, %v452
      %v460 = vsel %vm440, %v448, %v456
      %v461 = vmul.f32 %v431, %v457
      %v462 = vmul.f32 %v432, %v458
      %v463 = vmul.f32 %v433, %v459
      %v464 = vmul.f32 %v434, %v460
      %vm465 = vcmp.eq.s32.totalorder %v163, 1
      %vm466 = vcmp.eq.s32.totalorder %v164, 1
      %v467 = vsel %vm465, 1, 0
      %v468 = vsel %vm466, 1, 0
      %vm469 = vcmp.eq.s32.totalorder %v467, 1
      %vm470 = vcmp.eq.s32.totalorder %v468, 1
      %v471 = vlaneseq
      %v472 = vshrl.u32 %v471, 7
      %v473 = vsub.s32 6, %v472
      %v474 = vrot.slane %v305, %v473
      %v475 = vlaneseq
      %v476 = vshrl.u32 %v475, 7
      %v477 = vsub.s32 6, %v476
      %v478 = vrot.slane %v408, %v477
      %v479 = vlaneseq
      %v480 = vshrl.u32 %v479, 7
      %v481 = vsub.s32 2, %v480
      %v482 = vrot.slane %v305, %v481
      %v483 = vlaneseq
      %v484 = vshrl.u32 %v483, 7
      %v485 = vsub.s32 2, %v484
      %v486 = vrot.slane %v408, %v485
      %v487 = vsel %vm469, %v474, %v482
      %v488 = vsel %vm469, %v478, %v486
      %v489 = vsel %vm470, %v474, %v482
      %v490 = vsel %vm470, %v478, %v486
      %v491 = vmul.f32 %v461, %v487
      %v492 = vmul.f32 %v462, %v488
      %v493 = vmul.f32 %v463, %v489
      %v494 = vmul.f32 %v464, %v490
      %vm495 = vcmp.eq.s32.totalorder %v165, 1
      %vm496 = vcmp.eq.s32.totalorder %v166, 1
      %v497 = vsel %vm495, 1, 0
      %v498 = vsel %vm496, 1, 0
      %vm499 = vcmp.eq.s32.totalorder %v497, 1
      %vm500 = vcmp.eq.s32.totalorder %v498, 1
      %v501 = vlaneseq
      %v502 = vshrl.u32 %v501, 7
      %v503 = vsub.s32 7, %v502
      %v504 = vrot.slane %v305, %v503
      %v505 = vlaneseq
      %v506 = vshrl.u32 %v505, 7
      %v507 = vsub.s32 7, %v506
      %v508 = vrot.slane %v408, %v507
      %v509 = vlaneseq
      %v510 = vshrl.u32 %v509, 7
      %v511 = vsub.s32 3, %v510
      %v512 = vrot.slane %v305, %v511
      %v513 = vlaneseq
      %v514 = vshrl.u32 %v513, 7
      %v515 = vsub.s32 3, %v514
      %v516 = vrot.slane %v408, %v515
      %v517 = vsel %vm499, %v504, %v512
      %v518 = vsel %vm499, %v508, %v516
      %v519 = vsel %vm500, %v504, %v512
      %v520 = vsel %vm500, %v508, %v516
      %v521 = vmul.f32 %v491, %v517
      %v522 = vmul.f32 %v492, %v518
      %v523 = vmul.f32 %v493, %v519
      %v524 = vmul.f32 %v494, %v520
      %v525 = vpack.c.bf16 %v523, %v521
      %v526 = vpack.c.bf16 %v524, %v522
      %v529 = vunpack.c.l.b16 %v148
      %v530 = vunpack.c.l.b16 %v149
      %v531 = vpack.c.b16 %v530, %v529
      %vm532 = vcmask 130048
      %v534 = vsel %vm532, %v531, 0
      %536 = vmatprep.subr.bf16.mxu0 %v526
      %537 = vmatpush1.bf16.msra.mxu0 %v525
      %538 = vmatprep.subr.bf16.mxu0 0
      %539 = vmatpush1.bf16.msra.mxu0 0
      %540 = vmatprep.subr.bf16.mxu0 0
      %541 = vmatpush1.bf16.msra.mxu0 0
      %542 = vmatprep.subr.bf16.mxu0 0
      %543 = vmatpush1.bf16.msra.mxu0 0
      %544 = vmatprep.subr.bf16.mxu0 0
      %545 = vmatpush1.bf16.msra.mxu0 0
      %546 = vmatprep.subr.bf16.mxu0 0
      %547 = vmatpush1.bf16.msra.mxu0 0
      %548 = vmatprep.subr.bf16.mxu0 0
      %549 = vmatpush1.bf16.msra.mxu0 0
      %550 = vmatprep.subr.bf16.mxu0 0
      %551 = vmatpush1.bf16.msra.mxu0 0
      %552 = vmatprep.subr.bf16.mxu0 0
      %553 = vmatpush1.bf16.msra.mxu0 0
      %554 = vmatprep.subr.bf16.mxu0 0
      %555 = vmatpush1.bf16.msra.mxu0 0
      %556 = vmatprep.subr.bf16.mxu0 0
      %557 = vmatpush1.bf16.msra.mxu0 0
      %558 = vmatprep.subr.bf16.mxu0 0
      %559 = vmatpush1.bf16.msra.mxu0 0
      %560 = vmatprep.subr.bf16.mxu0 0
      %561 = vmatpush1.bf16.msra.mxu0 0
      %562 = vmatprep.subr.bf16.mxu0 0
      %563 = vmatpush1.bf16.msra.mxu0 0
      %564 = vmatprep.subr.bf16.mxu0 0
      %565 = vmatpush1.bf16.msra.mxu0 0
      %566 = vmatprep.subr.bf16.mxu0 0
      %567 = vmatpush1.bf16.msra.mxu0 0
      %568 = vmatprep.mubr.bf16.mxu0 0
      %569 = vmatmul.mubr.bf16.gmra.mrb[0].mxu0 %v534
      %v570 = vpop.f32.mrb[0].mxu0
      %v571 = vadd.f32 0.0, %v570
      %v572 = vpop.f32.mrb[0].mxu0
      %v573 = vadd.f32 0.0, %v572
      %v574 = vpop.f32.mrb[0].mxu0
      %v575 = vadd.f32 0.0, %v574
      %v576 = vpop.f32.mrb[0].mxu0
      %v577 = vadd.f32 0.0, %v576
      %578 = vdwg.mxu0
      %v579 = vmul.f32 %v571, %v571
      %v580 = vmul.f32 %v573, %v573
      %v581 = vmul.f32 %v575, %v575
      %v582 = vmul.f32 %v577, %v577
      %v583 = vmul.f32 %v579, %v171
      %v584 = vmul.f32 %v580, %v171
      %v585 = vmul.f32 %v581, %v172
      %v586 = vmul.f32 %v582, %v172
      %v587 = vadd.f32 %v583, %v585
      %v588 = vrot.slane %v587, 4
      %v589 = vadd.f32 %v587, %v588
      %v590 = vrot.slane %v589, 2
      %v591 = vadd.f32 %v589, %v590
      %v592 = vrot.slane %v591, 1
      %v593 = vadd.f32 %v591, %v592
      %v594 = vadd.f32 %v584, %v586
      %v595 = vrot.slane %v594, 4
      %v596 = vadd.f32 %v594, %v595
      %v597 = vrot.slane %v596, 2
      %v598 = vadd.f32 %v596, %v597
      %v599 = vrot.slane %v598, 1
      %v600 = vadd.f32 %v598, %v599
      %v601 = vmul.f32 %v579, %v177
      %v602 = vmul.f32 %v580, %v177
      %v603 = vmul.f32 %v581, %v178
      %v604 = vmul.f32 %v582, %v178
      %v605 = vadd.f32 %v601, %v603
      %v606 = vrot.slane %v605, 4
      %v607 = vadd.f32 %v605, %v606
      %v608 = vrot.slane %v607, 2
      %v609 = vadd.f32 %v607, %v608
      %v610 = vrot.slane %v609, 1
      %v611 = vadd.f32 %v609, %v610
      %v612 = vadd.f32 %v602, %v604
      %v613 = vrot.slane %v612, 4
      %v614 = vadd.f32 %v612, %v613
      %v615 = vrot.slane %v614, 2
      %v616 = vadd.f32 %v614, %v615
      %v617 = vrot.slane %v616, 1
      %v618 = vadd.f32 %v616, %v617
      %v619 = vmul.f32 %v579, %v183
      %v620 = vmul.f32 %v580, %v183
      %v621 = vmul.f32 %v581, %v184
      %v622 = vmul.f32 %v582, %v184
      %v623 = vadd.f32 %v619, %v621
      %v624 = vrot.slane %v623, 4
      %v625 = vadd.f32 %v623, %v624
      %v626 = vrot.slane %v625, 2
      %v627 = vadd.f32 %v625, %v626
      %v628 = vrot.slane %v627, 1
      %v629 = vadd.f32 %v627, %v628
      %v630 = vadd.f32 %v620, %v622
      %v631 = vrot.slane %v630, 4
      %v632 = vadd.f32 %v630, %v631
      %v633 = vrot.slane %v632, 2
      %v634 = vadd.f32 %v632, %v633
      %v635 = vrot.slane %v634, 1
      %v636 = vadd.f32 %v634, %v635
      %v637 = vmul.f32 %v579, %v189
      %v638 = vmul.f32 %v580, %v189
      %v639 = vmul.f32 %v581, %v190
      %v640 = vmul.f32 %v582, %v190
      %v641 = vadd.f32 %v637, %v639
      %v642 = vrot.slane %v641, 4
      %v643 = vadd.f32 %v641, %v642
      %v644 = vrot.slane %v643, 2
      %v645 = vadd.f32 %v643, %v644
      %v646 = vrot.slane %v645, 1
      %v647 = vadd.f32 %v645, %v646
      %v648 = vadd.f32 %v638, %v640
      %v649 = vrot.slane %v648, 4
      %v650 = vadd.f32 %v648, %v649
      %v651 = vrot.slane %v650, 2
      %v652 = vadd.f32 %v650, %v651
      %v653 = vrot.slane %v652, 1
      %v654 = vadd.f32 %v652, %v653
      %vm655 = vcmask 1040384
      %v656 = vsel %vm655, %v593, %v611
      %v657 = vsel %vm655, %v600, %v618
      %vm658 = vcmask 1041408
      %v659 = vsel %vm658, %v656, %v629
      %v660 = vsel %vm658, %v657, %v636
      %vm661 = vcmask 1042432
      %v662 = vsel %vm661, %v659, %v647
      %v663 = vsel %vm661, %v660, %v654
      %v666 = vcombine.low %v662, %v663
      %668 = vst [vmem:[%s145] sm:$0xff] %v666
      %s669 = smul.u32 2, %s13
      %p670 = scmp.lt.s32.totalorder %s669, 3
      %s671 = scalar_select %p670, %s669, 3
      %s672 = smul.addr %s671, 4
      %s673 = scalar_lea.vmem %s2, %s672
      // Predicated region
      $region29: #{quonv_layer.1} parent=27 // pred_check
        %p674 = pneg %p78
      $region30: #{quonv_layer.1} parent=27 // pred_check_branch
        %676 = sbr.rel (%p674) target = $region32
      $region31: #{quonv_layer.1} parent=27 // pred_region
        %s677 = smul.u32 2, %s13
      $region32: #{quonv_layer.1} parent=27 // pred_fallthru
        _
    $region28: #{quonv_layer.1} parent=5 // pred_fallthru
      _
    %p678 = scmp.le.s32.totalorder 2, %s8
    // Predicated region
    $region33: #{quonv_layer.1} parent=5 // pred_check
      %p679 = pneg %p678
    $region34: #{quonv_layer.1} parent=5 // pred_check_branch
      %681 = sbr.rel (%p679) target = $region36
    $region35: #{quonv_layer.1} parent=5 // pred_region
      %s682 = ssub.s32 %s8, 2
      // Predicated region
      $region37: #{quonv_layer.1} parent=35 // pred_check
        %p683 = pneg %p84
      $region38: #{quonv_layer.1} parent=35 // pred_check_branch
        %685 = sbr.rel (%p683) target = $region40
      $region39: #{quonv_layer.1} parent=35 // pred_region
        %s686 = smul.u32 2, %s14
        %p687 = scmp.lt.s32.totalorder %s686, 3
        %s688 = scalar_select %p687, %s686, 3
        %s689 = smul.addr %s688, 4
        %s690 = scalar_lea.vmem %s2, %s689
      $region40: #{quonv_layer.1} parent=35 // pred_fallthru
        _
    $region36: #{quonv_layer.1} parent=5 // pred_fallthru
      _
  $region6: #{quonv_layer.1} parent=0 // loop_footer
    %s12 = sadd.s32 1, %s8
  $region7: #{quonv_layer.1} parent=0 // loop_footer_branch
    %7 = sbr.rel target = $region3
  $region8: #{quonv_layer.1} parent=0 // loop_exit
    _

</llo_original>
